<compile_context>
chip_gen: v7x
topology: tpu7x:2x2x1
jax: 0.10.0
libtpu: 0.0.40
codegen_flags: <defaults>
</compile_context>

<pallas_src>
import functools

import jax
import jax.numpy as jnp
from jax.experimental import pallas as pl
from jax.experimental.pallas import tpu as pltpu

_LANE = 128
_SUBLANE_BF16 = 16   # bf16 packs 16 rows per vreg sublane group


def _cdiv(a, b):
    return -(-a // b)


def _round_up(n, m):
    return ((n + m - 1) // m) * m


def _leaky_relu(h, slope=0.01):
    return jnp.where(h > 0, h, slope * h)


def actor_kernel(num_actions,
                 x_ref,
                 w1_ref, b1_ref,
                 w2_ref, b2_ref,
                 w3_ref, b3_ref,
                 w4_ref, b4_ref,
                 lo_ref, hi_ref,
                 o_ref):
    def dense(h, w_ref, b_ref):
        # bf16 operands on the MXU, f32 accumulation, f32 epilogue.
        acc = jnp.dot(h.astype(jnp.bfloat16), w_ref[...],
                      preferred_element_type=jnp.float32)
        return acc + b_ref[...]

    h = x_ref[...]                                   # (TILE_B, num_states) bf16
    h = _leaky_relu(dense(h, w1_ref, b1_ref))        # (TILE_B, 32)  f32
    h = _leaky_relu(dense(h, w2_ref, b2_ref))        # (TILE_B, 64)  f32
    h = _leaky_relu(dense(h, w3_ref, b3_ref))        # (TILE_B, 128) f32

    # Last layer: weight is padded to 128 lanes for the MXU, but only the first
    # num_actions columns are real.  Slice BEFORE the bias/clamp/store so only
    # num_actions f32 columns ever go back to HBM.
    h4 = jnp.dot(h.astype(jnp.bfloat16), w4_ref[...],
                 preferred_element_type=jnp.float32)  # (TILE_B, 128)
    h4 = h4[:, :num_actions] + b4_ref[...]            # (TILE_B, num_actions)

    # Per-column clamp (torch.clamp with column-specific bounds).
    o_ref[...] = jnp.minimum(jnp.maximum(h4, lo_ref[...]),
                             hi_ref[...]).astype(o_ref.dtype)


def prepare_actor_params(params, lo, hi):
    """One-time parameter prep, hoisted out of the per-step hot path.

    params: list of (W, b) with W (in, out) = transpose of PyTorch weight.
    Returns (flat_param_tuple, num_actions).
    """
    ws = [w.astype(jnp.bfloat16) for (w, _) in params]
    bs = [b.astype(jnp.float32).reshape(1, -1) for (_, b) in params]
    num_actions = ws[-1].shape[1]

    # Pad only the last WEIGHT to a lane-dense 128-wide MXU operand; bias and
    # clamp bounds stay narrow (the kernel slices before the store).
    w4_pad = _round_up(num_actions, _LANE)
    w4 = jnp.zeros((ws[-1].shape[0], w4_pad), jnp.bfloat16)
    ws[-1] = w4.at[:, :num_actions].set(ws[-1])

    lo = jnp.asarray(lo, jnp.float32).reshape(1, -1)
    hi = jnp.asarray(hi, jnp.float32).reshape(1, -1)

    flat = []
    for w, b in zip(ws, bs):
        flat += [w, b]
    flat += [lo, hi]
    return tuple(flat), num_actions


@functools.partial(jax.jit, static_argnames=("num_actions", "tile_b_max"))
def actor_forward(x, prepared, num_actions, *, tile_b_max=1024):
    """x: (B, num_states) f32 (or bf16). prepared: output of prepare_actor_params."""
    B, num_states = x.shape

    # Padding-aware batch tiling:
    #  * choose the step count first so waste stays <= (sublane-1) rows,
    #  * even step count when multi-step -> balanced across v7x's 2 TensorCores,
    #  * big tiles amortize the ~0.35 us per-grid-step overhead.
    n_steps = max(1, _cdiv(B, tile_b_max))
    if n_steps > 1 and n_steps % 2:
        n_steps += 1
    tile_b = max(_SUBLANE_BF16, _round_up(_cdiv(B, n_steps), _SUBLANE_BF16))
    b_padded = n_steps * tile_b

    # bf16 input halves the x HBM DMA; accumulation stays f32 in-kernel.
    x_bf16 = x.astype(jnp.bfloat16)
    if b_padded != B:
        x_bf16 = jnp.zeros((b_padded, num_states), jnp.bfloat16).at[:B].set(x_bf16)

    def resident(shape):
        # Same block index every grid step -> stays VMEM-resident (no re-DMA).
        return pl.BlockSpec(shape, lambda i: (0, 0))

    in_specs = [pl.BlockSpec((tile_b, num_states), lambda i: (i, 0))]
    in_specs += [resident(p.shape) for p in prepared]

    out = pl.pallas_call(
        functools.partial(actor_kernel, num_actions),
        out_shape=jax.ShapeDtypeStruct((b_padded, num_actions), jnp.float32),
        grid=(n_steps,),
        in_specs=in_specs,
        out_specs=pl.BlockSpec((tile_b, num_actions), lambda i: (i, 0)),
        compiler_params=pltpu.CompilerParams(
            dimension_semantics=("parallel",)),   # v7x: shard batch over 2 TCs
    )(x_bf16, *prepared)

    return out[:B]


def actor_apply(x, prepared, num_actions, *, tile_b_max=1024):
    """Handles the module's rank-1 input path by reshaping to a 1-row batch."""
    if x.ndim == 1:
        return actor_forward(x[None, :], prepared, num_actions,
                             tile_b_max=tile_b_max)[0]
    return actor_forward(x, prepared, num_actions, tile_b_max=tile_b_max)


def init_actor_params(key, num_states, num_actions, init_w=0.003):
    """Deterministic synthetic init mirroring nn.Linear shapes.

    Weights stored as (in, out) = transpose of PyTorch's (out, in).
    """
    sizes = [(num_states, 32), (32, 64), (64, 128), (128, num_actions)]
    params = []
    for i, (fan_in, fan_out) in enumerate(sizes):
        key, kw, kb = jax.random.split(key, 3)
        if i < 3:
            bound = 1.0 / jnp.sqrt(jnp.float32(fan_in))   # nn.Linear default
        else:
            bound = jnp.float32(init_w)                   # uniform_(-init_w, init_w)
        w = jax.random.uniform(kw, (fan_in, fan_out), jnp.float32, -bound, bound)
        b = jax.random.uniform(kb, (1, fan_out), jnp.float32, -bound, bound)
        params.append((w, b))
    return params


def actor_reference(x, params, lo, hi):
    """Plain-JAX reference emulating the same bf16-operand / f32-accum math."""
    h = x.astype(jnp.bfloat16)
    for i, (w, b) in enumerate(params):
        h = jnp.dot(h.astype(jnp.bfloat16), w.astype(jnp.bfloat16),
                    preferred_element_type=jnp.float32) + b.reshape(1, -1)
        if i < 3:
            h = _leaky_relu(h)
    lo = jnp.asarray(lo, jnp.float32).reshape(1, -1)
    hi = jnp.asarray(hi, jnp.float32).reshape(1, -1)
    return jnp.minimum(jnp.maximum(h, lo), hi)


if __name__ == "__main__":
    num_states = 8
    num_actions = 4     # clamping in Actor.forward assumes 4 actions

    key = jax.random.PRNGKey(0)
    key, kp = jax.random.split(key)
    params = init_actor_params(kp, num_states, num_actions)

    # Per-action clamp bounds from Actor.forward
    lo = jnp.array([-24.0, -25.0, -30.0, 0.0], dtype=jnp.float32)
    hi = jnp.array([10.5, 25.0, 30.0, 1.0], dtype=jnp.float32)

    prepared, na = prepare_actor_params(params, lo, hi)

    # (batch, tile_b_max): 8 -> single small tile; 600 with default -> one big
    # tile (608 rows, <=8 rows waste); 600 with tile_b_max=256 -> 4 balanced
    # grid steps (even count for v7x) with resident weights.
    for batch, tmax in ((8, 1024), (600, 1024), (600, 256)):
        key, kx = jax.random.split(key)
        x = jax.random.normal(kx, (batch, num_states), jnp.float32) * 5.0

        out = jax.block_until_ready(
            actor_apply(x, prepared, na, tile_b_max=tmax))
        ref = actor_reference(x, params, lo, hi)

        assert out.shape == (batch, num_actions)
        assert jnp.allclose(out, ref, atol=2e-2, rtol=2e-2), (
            f"mismatch vs reference at batch={batch}, tile_b_max={tmax}")

    # Rank-1 input path (module supports a single un-batched state vector).
    key, kx = jax.random.split(key)
    x1 = jax.random.normal(kx, (num_states,), jnp.float32) * 5.0
    out1 = jax.block_until_ready(actor_apply(x1, prepared, na))
    ref1 = actor_reference(x1[None, :], params, lo, hi)[0]
    assert out1.shape == (num_actions,)
    assert jnp.allclose(out1, ref1, atol=2e-2, rtol=2e-2), "rank-1 mismatch"

    print("KERNEL_OK")
</pallas_src>

<mosaic_0001>
module attributes {stable_mosaic.version = 11 : i64} {
  func.func @actor_kernel(%arg0: i32, %arg1: memref<16x8xbf16, #tpu.memory_space<vmem>>, %arg2: memref<8x32xbf16, #tpu.memory_space<vmem>>, %arg3: memref<1x32xf32, #tpu.memory_space<vmem>>, %arg4: memref<32x64xbf16, #tpu.memory_space<vmem>>, %arg5: memref<1x64xf32, #tpu.memory_space<vmem>>, %arg6: memref<64x128xbf16, #tpu.memory_space<vmem>>, %arg7: memref<1x128xf32, #tpu.memory_space<vmem>>, %arg8: memref<128x128xbf16, #tpu.memory_space<vmem>>, %arg9: memref<1x4xf32, #tpu.memory_space<vmem>>, %arg10: memref<1x4xf32, #tpu.memory_space<vmem>>, %arg11: memref<1x4xf32, #tpu.memory_space<vmem>>, %arg12: memref<16x4xf32, #tpu.memory_space<vmem>>) attributes {dimension_semantics = [#tpu.dimension_semantics<parallel>], iteration_bounds = array<i64: 1>, scalar_prefetch = 0 : i64, scratch_operands = 0 : i64, tpu.core_type = #tpu.core_type<tc>, window_params = [{transform_indices = @transform_0, window_bounds = array<i64: 16, 8>}, {pipeline_mode = #tpu.pipeline_mode<synchronous>, transform_indices = @transform_1, window_bounds = array<i64: 8, 32>}, {pipeline_mode = #tpu.pipeline_mode<synchronous>, transform_indices = @transform_2, window_bounds = array<i64: 1, 32>}, {pipeline_mode = #tpu.pipeline_mode<synchronous>, transform_indices = @transform_3, window_bounds = array<i64: 32, 64>}, {pipeline_mode = #tpu.pipeline_mode<synchronous>, transform_indices = @transform_4, window_bounds = array<i64: 1, 64>}, {pipeline_mode = #tpu.pipeline_mode<synchronous>, transform_indices = @transform_5, window_bounds = array<i64: 64, 128>}, {pipeline_mode = #tpu.pipeline_mode<synchronous>, transform_indices = @transform_6, window_bounds = array<i64: 1, 128>}, {pipeline_mode = #tpu.pipeline_mode<synchronous>, transform_indices = @transform_7, window_bounds = array<i64: 128, 128>}, {pipeline_mode = #tpu.pipeline_mode<synchronous>, transform_indices = @transform_8, window_bounds = array<i64: 1, 4>}, {pipeline_mode = #tpu.pipeline_mode<synchronous>, transform_indices = @transform_9, window_bounds = array<i64: 1, 4>}, {pipeline_mode = #tpu.pipeline_mode<synchronous>, transform_indices = @transform_10, window_bounds = array<i64: 1, 4>}, {transform_indices = @transform_11, window_bounds = array<i64: 16, 4>}]} {
    %c0 = arith.constant 0 : index
    %c0_0 = arith.constant 0 : index
    %0 = vector.load %arg1[%c0, %c0_0] : memref<16x8xbf16, #tpu.memory_space<vmem>>, vector<16x8xbf16>
    %c0_1 = arith.constant 0 : index
    %c0_2 = arith.constant 0 : index
    %1 = vector.load %arg2[%c0_1, %c0_2] : memref<8x32xbf16, #tpu.memory_space<vmem>>, vector<8x32xbf16>
    %cst = arith.constant dense<0.000000e+00> : vector<16x32xf32>
    %2 = tpu.matmul %0, %1, %cst {dimension_numbers = #tpu.dot_dimension_numbers<[1], [0], [0], [1], [0, 0, 1, 1], [], []>} : vector<16x8xbf16>, vector<8x32xbf16>, vector<16x32xf32> -> vector<16x32xf32>
    %c0_3 = arith.constant 0 : index
    %c0_4 = arith.constant 0 : index
    %3 = vector.load %arg3[%c0_3, %c0_4] : memref<1x32xf32, #tpu.memory_space<vmem>>, vector<1x32xf32>
    %4 = vector.broadcast %3 : vector<1x32xf32> to vector<16x32xf32>
    %5 = arith.addf %2, %4 : vector<16x32xf32>
    %cst_5 = arith.constant 0.000000e+00 : f32
    %6 = vector.broadcast %cst_5 : f32 to vector<16x32xf32>
    %7 = arith.cmpf ogt, %5, %6 : vector<16x32xf32>
    %cst_6 = arith.constant 0.00999999977 : f32
    %8 = vector.broadcast %cst_6 : f32 to vector<16x32xf32>
    %9 = arith.mulf %8, %5 : vector<16x32xf32>
    %10 = arith.select %7, %5, %9 : vector<16x32xi1>, vector<16x32xf32>
    %11 = arith.truncf %10 : vector<16x32xf32> to vector<16x32xbf16>
    %c0_7 = arith.constant 0 : index
    %c0_8 = arith.constant 0 : index
    %12 = vector.load %arg4[%c0_7, %c0_8] : memref<32x64xbf16, #tpu.memory_space<vmem>>, vector<32x64xbf16>
    %cst_9 = arith.constant dense<0.000000e+00> : vector<16x64xf32>
    %13 = tpu.matmul %11, %12, %cst_9 {dimension_numbers = #tpu.dot_dimension_numbers<[1], [0], [0], [1], [0, 0, 1, 1], [], []>} : vector<16x32xbf16>, vector<32x64xbf16>, vector<16x64xf32> -> vector<16x64xf32>
    %c0_10 = arith.constant 0 : index
    %c0_11 = arith.constant 0 : index
    %14 = vector.load %arg5[%c0_10, %c0_11] : memref<1x64xf32, #tpu.memory_space<vmem>>, vector<1x64xf32>
    %15 = vector.broadcast %14 : vector<1x64xf32> to vector<16x64xf32>
    %16 = arith.addf %13, %15 : vector<16x64xf32>
    %cst_12 = arith.constant 0.000000e+00 : f32
    %17 = vector.broadcast %cst_12 : f32 to vector<16x64xf32>
    %18 = arith.cmpf ogt, %16, %17 : vector<16x64xf32>
    %cst_13 = arith.constant 0.00999999977 : f32
    %19 = vector.broadcast %cst_13 : f32 to vector<16x64xf32>
    %20 = arith.mulf %19, %16 : vector<16x64xf32>
    %21 = arith.select %18, %16, %20 : vector<16x64xi1>, vector<16x64xf32>
    %22 = arith.truncf %21 : vector<16x64xf32> to vector<16x64xbf16>
    %c0_14 = arith.constant 0 : index
    %c0_15 = arith.constant 0 : index
    %23 = vector.load %arg6[%c0_14, %c0_15] : memref<64x128xbf16, #tpu.memory_space<vmem>>, vector<64x128xbf16>
    %cst_16 = arith.constant dense<0.000000e+00> : vector<16x128xf32>
    %24 = tpu.matmul %22, %23, %cst_16 {dimension_numbers = #tpu.dot_dimension_numbers<[1], [0], [0], [1], [0, 0, 1, 1], [], []>} : vector<16x64xbf16>, vector<64x128xbf16>, vector<16x128xf32> -> vector<16x128xf32>
    %c0_17 = arith.constant 0 : index
    %c0_18 = arith.constant 0 : index
    %25 = vector.load %arg7[%c0_17, %c0_18] : memref<1x128xf32, #tpu.memory_space<vmem>>, vector<1x128xf32>
    %26 = vector.broadcast %25 : vector<1x128xf32> to vector<16x128xf32>
    %27 = arith.addf %24, %26 : vector<16x128xf32>
    %cst_19 = arith.constant 0.000000e+00 : f32
    %28 = vector.broadcast %cst_19 : f32 to vector<16x128xf32>
    %29 = arith.cmpf ogt, %27, %28 : vector<16x128xf32>
    %cst_20 = arith.constant 0.00999999977 : f32
    %30 = vector.broadcast %cst_20 : f32 to vector<16x128xf32>
    %31 = arith.mulf %30, %27 : vector<16x128xf32>
    %32 = arith.select %29, %27, %31 : vector<16x128xi1>, vector<16x128xf32>
    %33 = arith.truncf %32 : vector<16x128xf32> to vector<16x128xbf16>
    %c0_21 = arith.constant 0 : index
    %c0_22 = arith.constant 0 : index
    %34 = vector.load %arg8[%c0_21, %c0_22] : memref<128x128xbf16, #tpu.memory_space<vmem>>, vector<128x128xbf16>
    %cst_23 = arith.constant dense<0.000000e+00> : vector<16x128xf32>
    %35 = tpu.matmul %33, %34, %cst_23 {dimension_numbers = #tpu.dot_dimension_numbers<[1], [0], [0], [1], [0, 0, 1, 1], [], []>} : vector<16x128xbf16>, vector<128x128xbf16>, vector<16x128xf32> -> vector<16x128xf32>
    %36 = vector.extract_strided_slice %35 {offsets = [0, 0], sizes = [16, 4], strides = [1, 1]} : vector<16x128xf32> to vector<16x4xf32>
    %c0_24 = arith.constant 0 : index
    %c0_25 = arith.constant 0 : index
    %37 = vector.load %arg9[%c0_24, %c0_25] : memref<1x4xf32, #tpu.memory_space<vmem>>, vector<1x4xf32>
    %38 = vector.broadcast %37 : vector<1x4xf32> to vector<16x4xf32>
    %39 = arith.addf %36, %38 : vector<16x4xf32>
    %c0_26 = arith.constant 0 : index
    %c0_27 = arith.constant 0 : index
    %40 = vector.load %arg10[%c0_26, %c0_27] : memref<1x4xf32, #tpu.memory_space<vmem>>, vector<1x4xf32>
    %41 = vector.broadcast %40 : vector<1x4xf32> to vector<16x4xf32>
    %42 = arith.maximumf %39, %41 : vector<16x4xf32>
    %c0_28 = arith.constant 0 : index
    %c0_29 = arith.constant 0 : index
    %43 = vector.load %arg11[%c0_28, %c0_29] : memref<1x4xf32, #tpu.memory_space<vmem>>, vector<1x4xf32>
    %44 = vector.broadcast %43 : vector<1x4xf32> to vector<16x4xf32>
    %45 = arith.minimumf %42, %44 : vector<16x4xf32>
    %c0_30 = arith.constant 0 : index
    %c0_31 = arith.constant 0 : index
    %46 = vector.load %arg12[%c0_30, %c0_31] : memref<16x4xf32, #tpu.memory_space<vmem>>, vector<16x4xf32>
    tpu.vector_store %arg12[%c0_30, %c0_31], %45 {strides = array<i32>} : memref<16x4xf32, #tpu.memory_space<vmem>>, vector<16x4xf32>,
    return
  }
  func.func @transform_0(%arg0: i32) -> (i32, i32) {
    %c0_i32 = arith.constant 0 : i32
    %c0_i32_0 = arith.constant 0 : i32
    return %arg0, %c0_i32 : i32, i32
  }
  func.func @transform_1(%arg0: i32) -> (i32, i32) {
    %c0_i32 = arith.constant 0 : i32
    %c0_i32_0 = arith.constant 0 : i32
    %c0_i32_1 = arith.constant 0 : i32
    return %c0_i32, %c0_i32_0 : i32, i32
  }
  func.func @transform_2(%arg0: i32) -> (i32, i32) {
    %c0_i32 = arith.constant 0 : i32
    %c0_i32_0 = arith.constant 0 : i32
    %c0_i32_1 = arith.constant 0 : i32
    return %c0_i32, %c0_i32_0 : i32, i32
  }
  func.func @transform_3(%arg0: i32) -> (i32, i32) {
    %c0_i32 = arith.constant 0 : i32
    %c0_i32_0 = arith.constant 0 : i32
    %c0_i32_1 = arith.constant 0 : i32
    return %c0_i32, %c0_i32_0 : i32, i32
  }
  func.func @transform_4(%arg0: i32) -> (i32, i32) {
    %c0_i32 = arith.constant 0 : i32
    %c0_i32_0 = arith.constant 0 : i32
    %c0_i32_1 = arith.constant 0 : i32
    return %c0_i32, %c0_i32_0 : i32, i32
  }
  func.func @transform_5(%arg0: i32) -> (i32, i32) {
    %c0_i32 = arith.constant 0 : i32
    %c0_i32_0 = arith.constant 0 : i32
    %c0_i32_1 = arith.constant 0 : i32
    return %c0_i32, %c0_i32_0 : i32, i32
  }
  func.func @transform_6(%arg0: i32) -> (i32, i32) {
    %c0_i32 = arith.constant 0 : i32
    %c0_i32_0 = arith.constant 0 : i32
    %c0_i32_1 = arith.constant 0 : i32
    return %c0_i32, %c0_i32_0 : i32, i32
  }
  func.func @transform_7(%arg0: i32) -> (i32, i32) {
    %c0_i32 = arith.constant 0 : i32
    %c0_i32_0 = arith.constant 0 : i32
    %c0_i32_1 = arith.constant 0 : i32
    return %c0_i32, %c0_i32_0 : i32, i32
  }
  func.func @transform_8(%arg0: i32) -> (i32, i32) {
    %c0_i32 = arith.constant 0 : i32
    %c0_i32_0 = arith.constant 0 : i32
    %c0_i32_1 = arith.constant 0 : i32
    return %c0_i32, %c0_i32_0 : i32, i32
  }
  func.func @transform_9(%arg0: i32) -> (i32, i32) {
    %c0_i32 = arith.constant 0 : i32
    %c0_i32_0 = arith.constant 0 : i32
    %c0_i32_1 = arith.constant 0 : i32
    return %c0_i32, %c0_i32_0 : i32, i32
  }
  func.func @transform_10(%arg0: i32) -> (i32, i32) {
    %c0_i32 = arith.constant 0 : i32
    %c0_i32_0 = arith.constant 0 : i32
    %c0_i32_1 = arith.constant 0 : i32
    return %c0_i32, %c0_i32_0 : i32, i32
  }
  func.func @transform_11(%arg0: i32) -> (i32, i32) {
    %c0_i32 = arith.constant 0 : i32
    %c0_i32_0 = arith.constant 0 : i32
    return %arg0, %c0_i32 : i32, i32
  }
}

</mosaic_0001>

<llo_original>
// kernel: actor_forward.1
$region0: #{actor_forward.1}
  #allocation0 [shape = 'u32[]', space=smem, size = 0x4, offset = 0x4, fixed_abs, tag = 'smem constant byte address 0x4 - core index']
  #allocation1 [shape = 'u32[144,128]{1,0:T(1,128)}', space=vmem, size = 0x12000, scoped, tag = 'internal scratch']
  %s0 = inlined_call_operand.vmem [shape: bf16[16,8], index: 0, kind: input, shape index: {}]
  %s1 = inlined_call_operand.vmem [shape: bf16[8,32], index: 1, kind: input, shape index: {}]
  %s2 = inlined_call_operand.vmem [shape: f32[1,32], index: 2, kind: input, shape index: {}]
  %s3 = inlined_call_operand.hbm [shape: bf16[32,64], index: 3, kind: input, shape index: {}]
  %s4 = inlined_call_operand.vmem [shape: f32[1,64], index: 4, kind: input, shape index: {}]
  %s5 = inlined_call_operand.vmem [shape: bf16[64,128], index: 5, kind: input, shape index: {}]
  %s6 = inlined_call_operand.vmem [shape: f32[1,128], index: 6, kind: input, shape index: {}]
  %s7 = inlined_call_operand.hbm [shape: bf16[128,128], index: 7, kind: input, shape index: {}]
  %s8 = inlined_call_operand.vmem [shape: f32[1,4], index: 8, kind: input, shape index: {}]
  %s9 = inlined_call_operand.vmem [shape: f32[1,4], index: 9, kind: input, shape index: {}]
  %s10 = inlined_call_operand.vmem [shape: f32[1,4], index: 10, kind: input, shape index: {}]
  %s11 = inlined_call_operand.vmem [shape: f32[16,4], index: 11, kind: output, shape index: {}]
  %s12 = sld [smem:[#allocation0]]
  $region62: #{actor_forward.1} parent=0
    _
  %s14 = ssub.s32 1, %s12
  %s15 = scalar_select 0, %s14, %s12
  $region1: #{actor_forward.1} parent=0
    #allocation2 [shape = 'u8[8192]{0}', space=vmem, size = 0x2000, scoped, tag = 'input window, operand 3, single buffered']
    #allocation3 [shape = 's32[1]{0}', space=sflag, size = 0x4, scoped, tag = 'scoped memory for actor_forward.1']
    #allocation4 [shape = 'u8[32768]{0}', space=vmem, size = 0x8000, scoped, tag = 'input window, operand 7, single buffered']
    #allocation5 [shape = 's32[1]{0}', space=sflag, size = 0x4, scoped, tag = 'scoped memory for actor_forward.1']
    %16 = vsyncpa [#allocation3], 0
    %17 = vsyncpa [#allocation5], 0
    // Predicated region
    $region2: #{actor_forward.1} parent=1 // pred_check
      _
    $region3: #{actor_forward.1} parent=1 // pred_check_branch
      %19 = sbr.rel (0) target = $region5
    $region4: #{actor_forward.1} parent=1 // pred_region
      _
    $region5: #{actor_forward.1} parent=1 // pred_fallthru
      _
    // Predicated region
    $region6: #{actor_forward.1} parent=1 // pred_check
      _
    $region7: #{actor_forward.1} parent=1 // pred_check_branch
      %21 = sbr.rel (0) target = $region9
    $region8: #{actor_forward.1} parent=1 // pred_region
      _
    $region9: #{actor_forward.1} parent=1 // pred_fallthru
      _
    // Predicated region
    $region10: #{actor_forward.1} parent=1 // pred_check
      _
    $region11: #{actor_forward.1} parent=1 // pred_check_branch
      %23 = sbr.rel (0) target = $region13
    $region12: #{actor_forward.1} parent=1 // pred_region
      _
    $region13: #{actor_forward.1} parent=1 // pred_fallthru
      _
    // Predicated region
    $region14: #{actor_forward.1} parent=1 // pred_check
      _
    $region15: #{actor_forward.1} parent=1 // pred_check_branch
      %25 = sbr.rel (0) target = $region17
    $region16: #{actor_forward.1} parent=1 // pred_region
      %s27 = ssub.s32 256, 256
      %28 = vsyncadd [#allocation3], %s27
      %s29 = sshll.u32 [#allocation2], 4
      %s30 = int_to_ptr.vmem [resolvable:$true] %s29
      %35 = dma.hbm_to_vmem [thread:$0]  %s3, 256, %s30, [#allocation3], 64, 64, 4
    $region17: #{actor_forward.1} parent=1 // pred_fallthru
      _
    // Predicated region
    $region18: #{actor_forward.1} parent=1 // pred_check
      _
    $region19: #{actor_forward.1} parent=1 // pred_check_branch
      %37 = sbr.rel (0) target = $region21
    $region20: #{actor_forward.1} parent=1 // pred_region
      _
    $region21: #{actor_forward.1} parent=1 // pred_fallthru
      _
    // Predicated region
    $region22: #{actor_forward.1} parent=1 // pred_check
      _
    $region23: #{actor_forward.1} parent=1 // pred_check_branch
      %39 = sbr.rel (0) target = $region25
    $region24: #{actor_forward.1} parent=1 // pred_region
      _
    $region25: #{actor_forward.1} parent=1 // pred_fallthru
      _
    // Predicated region
    $region26: #{actor_forward.1} parent=1 // pred_check
      _
    $region27: #{actor_forward.1} parent=1 // pred_check_branch
      %41 = sbr.rel (0) target = $region29
    $region28: #{actor_forward.1} parent=1 // pred_region
      _
    $region29: #{actor_forward.1} parent=1 // pred_fallthru
      _
    // Predicated region
    $region30: #{actor_forward.1} parent=1 // pred_check
      _
    $region31: #{actor_forward.1} parent=1 // pred_check_branch
      %43 = sbr.rel (0) target = $region33
    $region32: #{actor_forward.1} parent=1 // pred_region
      %s45 = ssub.s32 1024, 1024
      %46 = vsyncadd [#allocation5], %s45
      %s47 = sshll.u32 [#allocation4], 4
      %s48 = int_to_ptr.vmem [resolvable:$true] %s47
      %53 = dma.hbm_to_vmem [thread:$0]  %s7, 1024, %s48, [#allocation5], 64, 64, 4
    $region33: #{actor_forward.1} parent=1 // pred_fallthru
      _
    // Predicated region
    $region34: #{actor_forward.1} parent=1 // pred_check
      _
    $region35: #{actor_forward.1} parent=1 // pred_check_branch
      %55 = sbr.rel (0) target = $region37
    $region36: #{actor_forward.1} parent=1 // pred_region
      _
    $region37: #{actor_forward.1} parent=1 // pred_fallthru
      _
    // Predicated region
    $region38: #{actor_forward.1} parent=1 // pred_check
      _
    $region39: #{actor_forward.1} parent=1 // pred_check_branch
      %57 = sbr.rel (0) target = $region41
    $region40: #{actor_forward.1} parent=1 // pred_region
      _
    $region41: #{actor_forward.1} parent=1 // pred_fallthru
      _
    // Predicated region
    $region42: #{actor_forward.1} parent=1 // pred_check
      _
    $region43: #{actor_forward.1} parent=1 // pred_check_branch
      %59 = sbr.rel (0) target = $region45
    $region44: #{actor_forward.1} parent=1 // pred_region
      _
    $region45: #{actor_forward.1} parent=1 // pred_fallthru
      _
    // Predicated region
    $region46: #{actor_forward.1} parent=1 // pred_check
      _
    $region47: #{actor_forward.1} parent=1 // pred_check_branch
      %61 = sbr.rel (0) target = $region49
    $region48: #{actor_forward.1} parent=1 // pred_region
      %62 = dma.done [#allocation3], 256
    $region49: #{actor_forward.1} parent=1 // pred_fallthru
      _
    // Predicated region
    $region50: #{actor_forward.1} parent=1 // pred_check
      _
    $region51: #{actor_forward.1} parent=1 // pred_check_branch
      %64 = sbr.rel (0) target = $region53
    $region52: #{actor_forward.1} parent=1 // pred_region
      %65 = dma.done [#allocation5], 1024
    $region53: #{actor_forward.1} parent=1 // pred_fallthru
      _
    %v67 = vld [vmem:[%s0] sm:$0xf]
    %v68 = vld [vmem:[%s0 + $0x4] sm:$0xf]
    %v69 = vld [vmem:[%s1] sm:$0xf]
    %v70 = vld [vmem:[%s2] sm:$0x1]
    %v72 = vlaneseq
    %v73 = vshrl.u32 %v72, 7
    %v74 = vsub.s32 0, %v73
    %v75 = vrot.slane %v70, %v74
    %v79 = vunpack.c.l.b16 %v67
    %v80 = vunpack.c.l.b16 %v68
    %v81 = vpack.c.b16 %v80, %v79
    %vm82 = vcmask 64512
    %v84 = vsel %vm82, %v81, 0
    %vm86 = vcmask 1043456
    %v88 = vsel %vm86, %v69, 0
    %90 = vmatprep.subr.bf16.mxu0 0
    %91 = vmatpush1.bf16.msra.mxu0 %v88
    %92 = vmatprep.subr.bf16.mxu0 0
    %93 = vmatpush1.bf16.msra.mxu0 0
    %94 = vmatprep.subr.bf16.mxu0 0
    %95 = vmatpush1.bf16.msra.mxu0 0
    %96 = vmatprep.subr.bf16.mxu0 0
    %97 = vmatpush1.bf16.msra.mxu0 0
    %98 = vmatprep.subr.bf16.mxu0 0
    %99 = vmatpush1.bf16.msra.mxu0 0
    %100 = vmatprep.subr.bf16.mxu0 0
    %101 = vmatpush1.bf16.msra.mxu0 0
    %102 = vmatprep.subr.bf16.mxu0 0
    %103 = vmatpush1.bf16.msra.mxu0 0
    %104 = vmatprep.subr.bf16.mxu0 0
    %105 = vmatpush1.bf16.msra.mxu0 0
    %106 = vmatprep.subr.bf16.mxu0 0
    %107 = vmatpush1.bf16.msra.mxu0 0
    %108 = vmatprep.subr.bf16.mxu0 0
    %109 = vmatpush1.bf16.msra.mxu0 0
    %110 = vmatprep.subr.bf16.mxu0 0
    %111 = vmatpush1.bf16.msra.mxu0 0
    %112 = vmatprep.subr.bf16.mxu0 0
    %113 = vmatpush1.bf16.msra.mxu0 0
    %114 = vmatprep.subr.bf16.mxu0 0
    %115 = vmatpush1.bf16.msra.mxu0 0
    %116 = vmatprep.subr.bf16.mxu0 0
    %117 = vmatpush1.bf16.msra.mxu0 0
    %118 = vmatprep.subr.bf16.mxu0 0
    %119 = vmatpush1.bf16.msra.mxu0 0
    %120 = vmatprep.subr.bf16.mxu0 0
    %121 = vmatpush1.bf16.msra.mxu0 0
    %122 = vmatprep.mubr.bf16.mxu0 0
    %123 = vmatmul.mubr.bf16.gmra.mrb[0].mxu0 %v84
    %v124 = vpop.f32.mrb[0].mxu0
    %v125 = vadd.f32 %v75, %v124
    %v126 = vpop.f32.mrb[0].mxu0
    %v127 = vpop.f32.mrb[0].mxu0
    %v128 = vadd.f32 %v75, %v127
    %v129 = vpop.f32.mrb[0].mxu0
    %130 = vdwg.mxu0
    %vm131 = vcmp.gt.f32.partialorder %v125, 0.0
    %vm132 = vcmp.gt.f32.partialorder %v128, 0.0
    %v133 = vmul.f32 %v125, 0.01
    %v134 = vmul.f32 %v128, 0.01
    %v135 = vsel %vm131, %v125, %v133
    %v136 = vsel %vm132, %v128, %v134
    %v137 = vpack.c.bf16 %v136, %v135
    %v138 = vld [vmem:[#allocation2] sm:$0xf]
    %v139 = vld [vmem:[#allocation2 + $0x4] sm:$0xf]
    %v140 = vld [vmem:[#allocation2 + $0x8] sm:$0xf]
    %v141 = vld [vmem:[#allocation2 + $0xc] sm:$0xf]
    %v142 = vld [vmem:[%s4] sm:$0x1]
    %v144 = vlaneseq
    %v145 = vshrl.u32 %v144, 7
    %v146 = vsub.s32 0, %v145
    %v147 = vrot.slane %v142, %v146
    %v153 = vunpack.c.l.b16 %v138
    %v154 = vunpack.c.l.b16 %v139
    %v155 = vunpack.c.l.b16 %v140
    %v156 = vunpack.c.l.b16 %v141
    %v157 = vpack.c.b16 %v154, %v153
    %v158 = vpack.c.b16 %v156, %v155
    %vm161 = vcmask 261120
    %v163 = vsel %vm161, %v137, 0
    %165 = vmatprep.subr.bf16.mxu0 0
    %166 = vmatpush1.bf16.msra.mxu0 %v157
    %167 = vmatprep.subr.bf16.mxu0 0
    %168 = vmatpush1.bf16.msra.mxu0 %v158
    %169 = vmatprep.subr.bf16.mxu0 0
    %170 = vmatpush1.bf16.msra.mxu0 0
    %171 = vmatprep.subr.bf16.mxu0 0
    %172 = vmatpush1.bf16.msra.mxu0 0
    %173 = vmatprep.subr.bf16.mxu0 0
    %174 = vmatpush1.bf16.msra.mxu0 0
    %175 = vmatprep.subr.bf16.mxu0 0
    %176 = vmatpush1.bf16.msra.mxu0 0
    %177 = vmatprep.subr.bf16.mxu0 0
    %178 = vmatpush1.bf16.msra.mxu0 0
    %179 = vmatprep.subr.bf16.mxu0 0
    %180 = vmatpush1.bf16.msra.mxu0 0
    %181 = vmatprep.subr.bf16.mxu0 0
    %182 = vmatpush1.bf16.msra.mxu0 0
    %183 = vmatprep.subr.bf16.mxu0 0
    %184 = vmatpush1.bf16.msra.mxu0 0
    %185 = vmatprep.subr.bf16.mxu0 0
    %186 = vmatpush1.bf16.msra.mxu0 0
    %187 = vmatprep.subr.bf16.mxu0 0
    %188 = vmatpush1.bf16.msra.mxu0 0
    %189 = vmatprep.subr.bf16.mxu0 0
    %190 = vmatpush1.bf16.msra.mxu0 0
    %191 = vmatprep.subr.bf16.mxu0 0
    %192 = vmatpush1.bf16.msra.mxu0 0
    %193 = vmatprep.subr.bf16.mxu0 0
    %194 = vmatpush1.bf16.msra.mxu0 0
    %195 = vmatprep.subr.bf16.mxu0 0
    %196 = vmatpush1.bf16.msra.mxu0 0
    %197 = vmatprep.mubr.bf16.mxu0 0
    %198 = vmatmul.mubr.bf16.gmra.mrb[0].mxu0 %v163
    %v199 = vpop.f32.mrb[0].mxu0
    %v200 = vadd.f32 %v147, %v199
    %v201 = vpop.f32.mrb[0].mxu0
    %v202 = vpop.f32.mrb[0].mxu0
    %v203 = vadd.f32 %v147, %v202
    %v204 = vpop.f32.mrb[0].mxu0
    %205 = vdwg.mxu0
    %vm206 = vcmp.gt.f32.partialorder %v200, 0.0
    %vm207 = vcmp.gt.f32.partialorder %v203, 0.0
    %v208 = vmul.f32 %v200, 0.01
    %v209 = vmul.f32 %v203, 0.01
    %v210 = vsel %vm206, %v200, %v208
    %v211 = vsel %vm207, %v203, %v209
    %v212 = vpack.c.bf16 %v211, %v210
    %v213 = vld [vmem:[%s5] sm:$0xf]
    %v214 = vld [vmem:[%s5 + $0x4] sm:$0xf]
    %v215 = vld [vmem:[%s5 + $0x8] sm:$0xf]
    %v216 = vld [vmem:[%s5 + $0xc] sm:$0xf]
    %v217 = vld [vmem:[%s5 + $0x10] sm:$0xf]
    %v218 = vld [vmem:[%s5 + $0x14] sm:$0xf]
    %v219 = vld [vmem:[%s5 + $0x18] sm:$0xf]
    %v220 = vld [vmem:[%s5 + $0x1c] sm:$0xf]
    %v221 = vld [vmem:[%s6] sm:$0x1]
    %v223 = vlaneseq
    %v224 = vshrl.u32 %v223, 7
    %v225 = vsub.s32 0, %v224
    %v226 = vrot.slane %v221, %v225
    %v236 = vunpack.c.l.b16 %v213
    %v237 = vunpack.c.l.b16 %v214
    %v238 = vunpack.c.l.b16 %v215
    %v239 = vunpack.c.l.b16 %v216
    %v240 = vunpack.c.l.b16 %v217
    %v241 = vunpack.c.l.b16 %v218
    %v242 = vunpack.c.l.b16 %v219
    %v243 = vunpack.c.l.b16 %v220
    %v244 = vpack.c.b16 %v237, %v236
    %v245 = vpack.c.b16 %v239, %v238
    %v246 = vpack.c.b16 %v241, %v240
    %v247 = vpack.c.b16 %v243, %v242
    %vm252 = vcmask 523264
    %v254 = vsel %vm252, %v212, 0
    %256 = vmatprep.subr.bf16.mxu0 0
    %257 = vmatpush1.bf16.msra.mxu0 %v244
    %258 = vmatprep.subr.bf16.mxu0 0
    %259 = vmatpush1.bf16.msra.mxu0 %v245
    %260 = vmatprep.subr.bf16.mxu0 0
    %261 = vmatpush1.bf16.msra.mxu0 %v246
    %262 = vmatprep.subr.bf16.mxu0 0
    %263 = vmatpush1.bf16.msra.mxu0 %v247
    %264 = vmatprep.subr.bf16.mxu0 0
    %265 = vmatpush1.bf16.msra.mxu0 0
    %266 = vmatprep.subr.bf16.mxu0 0
    %267 = vmatpush1.bf16.msra.mxu0 0
    %268 = vmatprep.subr.bf16.mxu0 0
    %269 = vmatpush1.bf16.msra.mxu0 0
    %270 = vmatprep.subr.bf16.mxu0 0
    %271 = vmatpush1.bf16.msra.mxu0 0
    %272 = vmatprep.subr.bf16.mxu0 0
    %273 = vmatpush1.bf16.msra.mxu0 0
    %274 = vmatprep.subr.bf16.mxu0 0
    %275 = vmatpush1.bf16.msra.mxu0 0
    %276 = vmatprep.subr.bf16.mxu0 0
    %277 = vmatpush1.bf16.msra.mxu0 0
    %278 = vmatprep.subr.bf16.mxu0 0
    %279 = vmatpush1.bf16.msra.mxu0 0
    %280 = vmatprep.subr.bf16.mxu0 0
    %281 = vmatpush1.bf16.msra.mxu0 0
    %282 = vmatprep.subr.bf16.mxu0 0
    %283 = vmatpush1.bf16.msra.mxu0 0
    %284 = vmatprep.subr.bf16.mxu0 0
    %285 = vmatpush1.bf16.msra.mxu0 0
    %286 = vmatprep.subr.bf16.mxu0 0
    %287 = vmatpush1.bf16.msra.mxu0 0
    %288 = vmatprep.mubr.bf16.mxu0 0
    %289 = vmatmul.mubr.bf16.gmra.mrb[0].mxu0 %v254
    %v290 = vpop.f32.mrb[0].mxu0
    %v291 = vadd.f32 %v226, %v290
    %v292 = vpop.f32.mrb[0].mxu0
    %v293 = vpop.f32.mrb[0].mxu0
    %v294 = vadd.f32 %v226, %v293
    %v295 = vpop.f32.mrb[0].mxu0
    %296 = vdwg.mxu0
    %vm297 = vcmp.gt.f32.partialorder %v291, 0.0
    %vm298 = vcmp.gt.f32.partialorder %v294, 0.0
    %v299 = vmul.f32 %v291, 0.01
    %v300 = vmul.f32 %v294, 0.01
    %v301 = vsel %vm297, %v291, %v299
    %v302 = vsel %vm298, %v294, %v300
    %v303 = vpack.c.bf16 %v302, %v301
    %v304 = vld [vmem:[#allocation4] sm:$0xf]
    %v305 = vld [vmem:[#allocation4 + $0x4] sm:$0xf]
    %v306 = vld [vmem:[#allocation4 + $0x8] sm:$0xf]
    %v307 = vld [vmem:[#allocation4 + $0xc] sm:$0xf]
    %v308 = vld [vmem:[#allocation4 + $0x10] sm:$0xf]
    %v309 = vld [vmem:[#allocation4 + $0x14] sm:$0xf]
    %v310 = vld [vmem:[#allocation4 + $0x18] sm:$0xf]
    %v311 = vld [vmem:[#allocation4 + $0x1c] sm:$0xf]
    %v312 = vld [vmem:[#allocation4 + $0x20] sm:$0xf]
    %v313 = vld [vmem:[#allocation4 + $0x24] sm:$0xf]
    %v314 = vld [vmem:[#allocation4 + $0x28] sm:$0xf]
    %v315 = vld [vmem:[#allocation4 + $0x2c] sm:$0xf]
    %v316 = vld [vmem:[#allocation4 + $0x30] sm:$0xf]
    %v317 = vld [vmem:[#allocation4 + $0x34] sm:$0xf]
    %v318 = vld [vmem:[#allocation4 + $0x38] sm:$0xf]
    %v319 = vld [vmem:[#allocation4 + $0x3c] sm:$0xf]
    %v336 = vunpack.c.l.b16 %v304
    %v337 = vunpack.c.l.b16 %v305
    %v338 = vunpack.c.l.b16 %v306
    %v339 = vunpack.c.l.b16 %v307
    %v340 = vunpack.c.l.b16 %v308
    %v341 = vunpack.c.l.b16 %v309
    %v342 = vunpack.c.l.b16 %v310
    %v343 = vunpack.c.l.b16 %v311
    %v344 = vunpack.c.l.b16 %v312
    %v345 = vunpack.c.l.b16 %v313
    %v346 = vunpack.c.l.b16 %v314
    %v347 = vunpack.c.l.b16 %v315
    %v348 = vunpack.c.l.b16 %v316
    %v349 = vunpack.c.l.b16 %v317
    %v350 = vunpack.c.l.b16 %v318
    %v351 = vunpack.c.l.b16 %v319
    %v352 = vpack.c.b16 %v337, %v336
    %v353 = vpack.c.b16 %v339, %v338
    %v354 = vpack.c.b16 %v341, %v340
    %v355 = vpack.c.b16 %v343, %v342
    %v356 = vpack.c.b16 %v345, %v344
    %v357 = vpack.c.b16 %v347, %v346
    %v358 = vpack.c.b16 %v349, %v348
    %v359 = vpack.c.b16 %v351, %v350
    %368 = vmatprep.subr.bf16.mxu0 0
    %369 = vmatpush1.bf16.msra.mxu0 %v352
    %370 = vmatprep.subr.bf16.mxu0 0
    %371 = vmatpush1.bf16.msra.mxu0 %v353
    %372 = vmatprep.subr.bf16.mxu0 0
    %373 = vmatpush1.bf16.msra.mxu0 %v354
    %374 = vmatprep.subr.bf16.mxu0 0
    %375 = vmatpush1.bf16.msra.mxu0 %v355
    %376 = vmatprep.subr.bf16.mxu0 0
    %377 = vmatpush1.bf16.msra.mxu0 %v356
    %378 = vmatprep.subr.bf16.mxu0 0
    %379 = vmatpush1.bf16.msra.mxu0 %v357
    %380 = vmatprep.subr.bf16.mxu0 0
    %381 = vmatpush1.bf16.msra.mxu0 %v358
    %382 = vmatprep.subr.bf16.mxu0 0
    %383 = vmatpush1.bf16.msra.mxu0 %v359
    %384 = vmatprep.subr.bf16.mxu0 0
    %385 = vmatpush1.bf16.msra.mxu0 0
    %386 = vmatprep.subr.bf16.mxu0 0
    %387 = vmatpush1.bf16.msra.mxu0 0
    %388 = vmatprep.subr.bf16.mxu0 0
    %389 = vmatpush1.bf16.msra.mxu0 0
    %390 = vmatprep.subr.bf16.mxu0 0
    %391 = vmatpush1.bf16.msra.mxu0 0
    %392 = vmatprep.subr.bf16.mxu0 0
    %393 = vmatpush1.bf16.msra.mxu0 0
    %394 = vmatprep.subr.bf16.mxu0 0
    %395 = vmatpush1.bf16.msra.mxu0 0
    %396 = vmatprep.subr.bf16.mxu0 0
    %397 = vmatpush1.bf16.msra.mxu0 0
    %398 = vmatprep.subr.bf16.mxu0 0
    %399 = vmatpush1.bf16.msra.mxu0 0
    %400 = vmatprep.mubr.bf16.mxu0 0
    %401 = vmatmul.mubr.bf16.gmra.mrb[0].mxu0 %v303
    %v402 = vpop.f32.mrb[0].mxu0
    %v403 = vadd.f32 0.0, %v402
    %v404 = vpop.f32.mrb[0].mxu0
    %v405 = vpop.f32.mrb[0].mxu0
    %v406 = vadd.f32 0.0, %v405
    %v407 = vpop.f32.mrb[0].mxu0
    %408 = vdwg.mxu0
    %v409 = vld [vmem:[%s8] sm:$0x1]
    %v411 = vlaneseq
    %v412 = vshrl.u32 %v411, 7
    %v413 = vsub.s32 0, %v412
    %v414 = vrot.slane %v409, %v413
    %v416 = vadd.f32 %v403, %v414
    %v417 = vadd.f32 %v406, %v414
    %v418 = vld [vmem:[%s9] sm:$0x1]
    %v420 = vlaneseq
    %v421 = vshrl.u32 %v420, 7
    %v422 = vsub.s32 0, %v421
    %v423 = vrot.slane %v418, %v422
    %v425 = vmax.f32 %v416, %v423
    %v426 = vmax.f32 %v417, %v423
    %v427 = vld [vmem:[%s10] sm:$0x1]
    %v429 = vlaneseq
    %v430 = vshrl.u32 %v429, 7
    %v431 = vsub.s32 0, %v430
    %v432 = vrot.slane %v427, %v431
    %v434 = vmin.f32 %v425, %v432
    %v435 = vmin.f32 %v426, %v432
    %vm436 = vcmask 31744
    %437 = vst.msk [vmem:[%s11] sm:$0xff] %vm436, %v434
    %438 = vst.msk [vmem:[%s11 + $0x8] sm:$0xff] %vm436, %v435
    // Predicated region
    $region54: #{actor_forward.1} parent=1 // pred_check
      _
    $region55: #{actor_forward.1} parent=1 // pred_check_branch
      %440 = sbr.rel (0) target = $region57
    $region56: #{actor_forward.1} parent=1 // pred_region
      _
    $region57: #{actor_forward.1} parent=1 // pred_fallthru
      _
    // Predicated region
    $region58: #{actor_forward.1} parent=1 // pred_check
      _
    $region59: #{actor_forward.1} parent=1 // pred_check_branch
      %442 = sbr.rel (0) target = $region61
    $region60: #{actor_forward.1} parent=1 // pred_region
      _
    $region61: #{actor_forward.1} parent=1 // pred_fallthru
      _
    %443 = vsyncpa [#allocation3], 1
    %444 = vsyncpa [#allocation5], 1

</llo_original>
